<compile_context>
chip_gen: v7x
topology: tpu7x:2x2x1
jax: 0.10.0
libtpu: 0.0.40
codegen_flags: <defaults>
</compile_context>

<pallas_src>
import jax
import jax.numpy as jnp
from jax.experimental import pallas as pl
from jax.experimental.pallas import tpu as pltpu


def _round_up(x: int, m: int) -> int:
    return ((x + m - 1) // m) * m


# ----------------------------------------------------------------------------
# Kernel
# ----------------------------------------------------------------------------
def _make_mlp_kernel(num_layers: int, activation: str, has_cond: bool,
                     compute_dtype):
    """Build an MLP kernel body.

    Ref order:
      x_ref, [c_ref], w0x, [w0c], b0, w1, b1, ..., w{L-1}, b{L-1}, out_ref
    Activation after every layer except the last (matches the PyTorch
    Sequential built in Generator.__init__).
    """

    def _act(h):
        if activation == 'tanh':
            return jnp.tanh(h)          # EUP slot
        return jnp.maximum(h, 0.0)      # 'relu' or anything else -> ReLU

    def kernel(*refs):
        idx = 0
        x_ref = refs[idx]; idx += 1
        c_ref = None
        if has_cond:
            c_ref = refs[idx]; idx += 1
        out_ref = refs[-1]

        # --- layer 0: split-K over (X | C); avoids wrapper-side concat ------
        w0x_ref = refs[idx]; idx += 1
        h = jnp.dot(x_ref[...], w0x_ref[...],
                    preferred_element_type=jnp.float32)
        if has_cond:
            w0c_ref = refs[idx]; idx += 1
            h = h + jnp.dot(c_ref[...], w0c_ref[...],
                            preferred_element_type=jnp.float32)
        b0_ref = refs[idx]; idx += 1
        h = h + b0_ref[...]             # f32 bias, (1, N) broadcasts over tile

        # --- remaining layers -----------------------------------------------
        for _ in range(1, num_layers):
            h = _act(h).astype(compute_dtype)
            w_ref = refs[idx]; idx += 1
            b_ref = refs[idx]; idx += 1
            h = jnp.dot(h, w_ref[...],
                        preferred_element_type=jnp.float32) + b_ref[...]

        out_ref[...] = h.astype(out_ref.dtype)

    return kernel


# ----------------------------------------------------------------------------
# Wrapper helpers
# ----------------------------------------------------------------------------
def _pick_batch_tile(B: int, batch_tile) -> int:
    """Batch tile: multiple of 16 (bf16 sublane pack), >=2 grid steps when
    possible (v7x megacore), 512 rows for very large batches."""
    if batch_tile is not None:
        tm = max(8, _round_up(int(batch_tile), 16))
    elif B <= 1024:
        tm = min(512, _round_up(pl.cdiv(B, 2), 16))
    else:
        tm = 512
    if tm >= B:
        tm = B   # single full-array tile; exempt from (8,128) alignment rule
    return tm


def _vmem_limit_bytes(param_bytes: int, tile_io_bytes: int) -> int:
    """Generation-aware VMEM cap with headroom for Mosaic internal scratch."""
    try:
        cap = int(getattr(pltpu.get_tpu_info(), "vmem_capacity_bytes",
                          128 << 20))
    except Exception:
        cap = 64 << 20                    # conservative (v7x per-TC)
    usable = (cap * 7) // 8               # ~56 MiB on v7x, ~112 MiB on v5e/v6e
    want = 2 * param_bytes + tile_io_bytes + (4 << 20)
    return int(min(usable, max(16 << 20, want)))


# ----------------------------------------------------------------------------
# Wrapper
# ----------------------------------------------------------------------------
def generator_forward(X, params, C=None, activation='tanh', batch_tile=None,
                      compute_dtype=jnp.bfloat16):
    """Forward pass of Generator.

    X: [batch, lat_size] float32
    C: [batch, cond_size] float32 or None
    params: list of (W, b) with W: [in_features, out_features], b: [out_features]
            (W[in,out] is the transpose of PyTorch's [out,in], so h @ W + b
             matches x @ W_pt.T + b.)
    compute_dtype: bf16 (default, MXU fast path) or float32 (correctness-check
                   path; notably slow on v5e).
    Returns: [batch, n_outputs] in X.dtype
    """
    B, lat = X.shape
    num_layers = len(params)
    has_cond = C is not None
    cond = C.shape[1] if has_cond else 0
    widths = [W.shape[1] for (W, _) in params]
    n_out = widths[-1]

    assert params[0][0].shape[0] == lat + cond, (
        f"params[0] has {params[0][0].shape[0]} input rows but "
        f"lat({lat}) + cond({cond}) = {lat + cond}")

    tm = _pick_batch_tile(B, batch_tile)
    grid = (pl.cdiv(B, tm),)

    flat_inputs = []
    in_specs = []

    # Streamed inputs: true (narrow) feature widths, no HBM padding copies.
    Xc = X.astype(compute_dtype)
    flat_inputs.append(Xc)
    in_specs.append(pl.BlockSpec((tm, lat), lambda i: (i, 0)))
    if has_cond:
        Cc = C.astype(compute_dtype)
        flat_inputs.append(Cc)
        in_specs.append(pl.BlockSpec((tm, cond), lambda i: (i, 0)))

    def _const_spec(arr):
        # Same block for every grid step -> weight stays VMEM-resident.
        return pl.BlockSpec(arr.shape, lambda i: (0, 0))

    # Layer 0: split W0 into the X-rows and C-rows (avoids concat of inputs).
    W0, b0 = params[0]
    W0x = W0[:lat].astype(compute_dtype)
    flat_inputs.append(W0x); in_specs.append(_const_spec(W0x))
    if has_cond:
        W0c = W0[lat:].astype(compute_dtype)
        flat_inputs.append(W0c); in_specs.append(_const_spec(W0c))
    b0r = b0.reshape(1, -1).astype(jnp.float32)
    flat_inputs.append(b0r); in_specs.append(_const_spec(b0r))

    # Remaining layers.
    for li in range(1, num_layers):
        W, b = params[li]
        Wc = W.astype(compute_dtype)
        br = b.reshape(1, -1).astype(jnp.float32)
        flat_inputs += [Wc, br]
        in_specs += [_const_spec(Wc), _const_spec(br)]

    out_dtype = X.dtype
    out_spec = pl.BlockSpec((tm, n_out), lambda i: (i, 0))

    # ---- compiler hints (true, un-padded sizes) -----------------------------
    act_itemsize = jnp.dtype(compute_dtype).itemsize
    out_itemsize = jnp.dtype(out_dtype).itemsize
    n_io = 1 + (1 if has_cond else 0)
    param_bytes = sum(int(a.size) * a.dtype.itemsize for a in flat_inputs[n_io:])
    io_bytes = sum(int(a.size) * a.dtype.itemsize for a in flat_inputs[:n_io])
    out_bytes = B * n_out * out_itemsize
    tile_io_bytes = (2 * tm * (lat + cond) * act_itemsize
                     + 2 * tm * n_out * out_itemsize)
    vmem_limit = _vmem_limit_bytes(param_bytes, tile_io_bytes)

    dims = [lat + cond] + widths
    flops = int(2 * B * sum(dims[i] * dims[i + 1] for i in range(num_layers)))
    transc = int(B * sum(widths[:-1])) if activation == 'tanh' else 0
    bytes_accessed = int(param_bytes + io_bytes + out_bytes)

    kernel = _make_mlp_kernel(num_layers, activation, has_cond, compute_dtype)

    out = pl.pallas_call(
        kernel,
        out_shape=jax.ShapeDtypeStruct((B, n_out), out_dtype),
        grid=grid,
        in_specs=in_specs,
        out_specs=out_spec,
        compiler_params=pltpu.CompilerParams(
            dimension_semantics=("parallel",),   # megacore sharding on v7x
            vmem_limit_bytes=vmem_limit,
        ),
        cost_estimate=pl.CostEstimate(flops=flops,
                                      transcendentals=transc,
                                      bytes_accessed=bytes_accessed),
    )(*flat_inputs)

    # TODO(synk): for hidden widths >= ~4096 the all-weights-resident strategy
    # should switch to a K/N-tiled grid (256-wide K/N tiles on v6e/v7x, 128 on
    # v5e) with a pl.when-initialized accumulator, and single-buffer the
    # resident weights via pipeline_mode=pl.Buffered(1) to fit v7x's 64 MiB.
    return out


# ----------------------------------------------------------------------------
# Deterministic parameter init (mimics nn.Linear default: U(-1/sqrt(fan_in), .))
# ----------------------------------------------------------------------------
def init_generator_params(key, n_inputs, n_outputs, hidden=(10,)):
    dims = [n_inputs] + list(hidden) + [n_outputs]
    params = []
    for i in range(len(dims) - 1):
        fan_in, fan_out = dims[i], dims[i + 1]
        key, kw, kb = jax.random.split(key, 3)
        bound = 1.0 / jnp.sqrt(fan_in)
        W = jax.random.uniform(kw, (fan_in, fan_out), jnp.float32, -bound, bound)
        b = jax.random.uniform(kb, (fan_out,), jnp.float32, -bound, bound)
        params.append((W, b))
    return params


def generator_forward_ref(X, params, C=None, activation='tanh'):
    """Pure-JAX reference for correctness checking."""
    Z = X if C is None else jnp.concatenate((X, C), axis=1)
    h = Z
    for li, (W, b) in enumerate(params):
        h = h @ W + b
        if li < len(params) - 1:
            h = jnp.tanh(h) if activation == 'tanh' else jnp.maximum(h, 0.0)
    return h


# ----------------------------------------------------------------------------
# Main
# ----------------------------------------------------------------------------
if __name__ == "__main__":
    key = jax.random.PRNGKey(0)

    # Small config consistent with the module defaults.
    batch = 8
    lat_size = 4
    cond_size = 4
    n_inputs = lat_size + cond_size   # X and C are concatenated in the module
    hidden = (32,)
    n_outputs = 16
    activation = 'tanh'

    key, kx, kc, kp = jax.random.split(key, 4)
    X = jax.random.normal(kx, (batch, lat_size), jnp.float32)
    C = jax.random.normal(kc, (batch, cond_size), jnp.float32)
    params = init_generator_params(kp, n_inputs, n_outputs, hidden)

    ref = generator_forward_ref(X, params, C=C, activation=activation)

    # bf16-MXU fast path (f32 accumulation) -> loose tolerance vs f32 reference.
    out = jax.block_until_ready(
        generator_forward(X, params, C=C, activation=activation,
                          compute_dtype=jnp.bfloat16))
    assert out.shape == (batch, n_outputs)
    assert out.dtype == X.dtype
    assert jnp.allclose(out, ref, atol=5e-2, rtol=5e-2), "bf16 path mismatch"

    # f32 compute path (correctness check only; not a perf path on v5e).
    out_f32 = jax.block_until_ready(
        generator_forward(X, params, C=C, activation=activation,
                          compute_dtype=jnp.float32))
    assert jnp.allclose(out_f32, ref, atol=1e-4, rtol=1e-4), "f32 path mismatch"

    # Unconditional path (C=None), as allowed by Generator.forward.
    params_nc = init_generator_params(jax.random.PRNGKey(1), lat_size,
                                      n_outputs, hidden)
    ref_nc = generator_forward_ref(X, params_nc, C=None, activation=activation)
    out_nc = jax.block_until_ready(
        generator_forward(X, params_nc, C=None, activation=activation,
                          compute_dtype=jnp.bfloat16))
    assert jnp.allclose(out_nc, ref_nc, atol=5e-2, rtol=5e-2), "no-cond mismatch"

    # Larger non-multiple batch, 2 hidden layers, ReLU:
    #   (a) default tiling -> >=2 grid steps + masked partial last tile,
    #   (b) user batch_tile not a multiple of 16 -> rounded up in the wrapper.
    kb = jax.random.PRNGKey(2)
    kb, kx2, kc2, kp2 = jax.random.split(kb, 4)
    B2, lat2, cond2, hid2, nout2 = 300, 6, 3, (64, 48), 5
    X2 = jax.random.normal(kx2, (B2, lat2), jnp.float32)
    C2 = jax.random.normal(kc2, (B2, cond2), jnp.float32)
    params2 = init_generator_params(kp2, lat2 + cond2, nout2, hid2)
    ref2 = generator_forward_ref(X2, params2, C=C2, activation='relu')

    out2a = jax.block_until_ready(
        generator_forward(X2, params2, C=C2, activation='relu',
                          compute_dtype=jnp.bfloat16))
    assert out2a.shape == (B2, nout2)
    assert jnp.allclose(out2a, ref2, atol=1e-1, rtol=1e-1), "multi-tile mismatch"

    out2b = jax.block_until_ready(
        generator_forward(X2, params2, C=C2, activation='relu',
                          compute_dtype=jnp.bfloat16, batch_tile=100))
    assert jnp.allclose(out2b, ref2, atol=1e-1, rtol=1e-1), "batch_tile mismatch"

    print("KERNEL_OK")
</pallas_src>

<mosaic_0001>
module attributes {stable_mosaic.version = 11 : i64} {
  func.func @kernel(%arg0: i32, %arg1: memref<8x4xbf16, #tpu.memory_space<vmem>>, %arg2: memref<8x4xbf16, #tpu.memory_space<vmem>>, %arg3: memref<4x32xbf16, #tpu.memory_space<vmem>>, %arg4: memref<4x32xbf16, #tpu.memory_space<vmem>>, %arg5: memref<1x32xf32, #tpu.memory_space<vmem>>, %arg6: memref<32x16xbf16, #tpu.memory_space<vmem>>, %arg7: memref<1x16xf32, #tpu.memory_space<vmem>>, %arg8: memref<8x16xf32, #tpu.memory_space<vmem>>) attributes {dimension_semantics = [#tpu.dimension_semantics<parallel>], iteration_bounds = array<i64: 1>, scalar_prefetch = 0 : i64, scratch_operands = 0 : i64, tpu.core_type = #tpu.core_type<tc>, window_params = [{transform_indices = @transform_0, window_bounds = array<i64: 8, 4>}, {transform_indices = @transform_1, window_bounds = array<i64: 8, 4>}, {pipeline_mode = #tpu.pipeline_mode<synchronous>, transform_indices = @transform_2, window_bounds = array<i64: 4, 32>}, {pipeline_mode = #tpu.pipeline_mode<synchronous>, transform_indices = @transform_3, window_bounds = array<i64: 4, 32>}, {pipeline_mode = #tpu.pipeline_mode<synchronous>, transform_indices = @transform_4, window_bounds = array<i64: 1, 32>}, {pipeline_mode = #tpu.pipeline_mode<synchronous>, transform_indices = @transform_5, window_bounds = array<i64: 32, 16>}, {pipeline_mode = #tpu.pipeline_mode<synchronous>, transform_indices = @transform_6, window_bounds = array<i64: 1, 16>}, {transform_indices = @transform_7, window_bounds = array<i64: 8, 16>}]} {
    %c0 = arith.constant 0 : index
    %c0_0 = arith.constant 0 : index
    %0 = vector.load %arg1[%c0, %c0_0] : memref<8x4xbf16, #tpu.memory_space<vmem>>, vector<8x4xbf16>
    %c0_1 = arith.constant 0 : index
    %c0_2 = arith.constant 0 : index
    %1 = vector.load %arg3[%c0_1, %c0_2] : memref<4x32xbf16, #tpu.memory_space<vmem>>, vector<4x32xbf16>
    %cst = arith.constant dense<0.000000e+00> : vector<8x32xf32>
    %2 = tpu.matmul %0, %1, %cst {dimension_numbers = #tpu.dot_dimension_numbers<[1], [0], [0], [1], [0, 0, 1, 1], [], []>} : vector<8x4xbf16>, vector<4x32xbf16>, vector<8x32xf32> -> vector<8x32xf32>
    %c0_3 = arith.constant 0 : index
    %c0_4 = arith.constant 0 : index
    %3 = vector.load %arg2[%c0_3, %c0_4] : memref<8x4xbf16, #tpu.memory_space<vmem>>, vector<8x4xbf16>
    %c0_5 = arith.constant 0 : index
    %c0_6 = arith.constant 0 : index
    %4 = vector.load %arg4[%c0_5, %c0_6] : memref<4x32xbf16, #tpu.memory_space<vmem>>, vector<4x32xbf16>
    %cst_7 = arith.constant dense<0.000000e+00> : vector<8x32xf32>
    %5 = tpu.matmul %3, %4, %cst_7 {dimension_numbers = #tpu.dot_dimension_numbers<[1], [0], [0], [1], [0, 0, 1, 1], [], []>} : vector<8x4xbf16>, vector<4x32xbf16>, vector<8x32xf32> -> vector<8x32xf32>
    %6 = arith.addf %2, %5 : vector<8x32xf32>
    %c0_8 = arith.constant 0 : index
    %c0_9 = arith.constant 0 : index
    %7 = vector.load %arg5[%c0_8, %c0_9] : memref<1x32xf32, #tpu.memory_space<vmem>>, vector<1x32xf32>
    %8 = vector.broadcast %7 : vector<1x32xf32> to vector<8x32xf32>
    %9 = arith.addf %6, %8 : vector<8x32xf32>
    %10 = math.tanh %9 : vector<8x32xf32>
    %11 = arith.truncf %10 : vector<8x32xf32> to vector<8x32xbf16>
    %c0_10 = arith.constant 0 : index
    %c0_11 = arith.constant 0 : index
    %12 = vector.load %arg6[%c0_10, %c0_11] : memref<32x16xbf16, #tpu.memory_space<vmem>>, vector<32x16xbf16>
    %cst_12 = arith.constant dense<0.000000e+00> : vector<8x16xf32>
    %13 = tpu.matmul %11, %12, %cst_12 {dimension_numbers = #tpu.dot_dimension_numbers<[1], [0], [0], [1], [0, 0, 1, 1], [], []>} : vector<8x32xbf16>, vector<32x16xbf16>, vector<8x16xf32> -> vector<8x16xf32>
    %c0_13 = arith.constant 0 : index
    %c0_14 = arith.constant 0 : index
    %14 = vector.load %arg7[%c0_13, %c0_14] : memref<1x16xf32, #tpu.memory_space<vmem>>, vector<1x16xf32>
    %15 = vector.broadcast %14 : vector<1x16xf32> to vector<8x16xf32>
    %16 = arith.addf %13, %15 : vector<8x16xf32>
    %c0_15 = arith.constant 0 : index
    %c0_16 = arith.constant 0 : index
    %17 = vector.load %arg8[%c0_15, %c0_16] : memref<8x16xf32, #tpu.memory_space<vmem>>, vector<8x16xf32>
    tpu.vector_store %arg8[%c0_15, %c0_16], %16 {strides = array<i32>} : memref<8x16xf32, #tpu.memory_space<vmem>>, vector<8x16xf32>,
    return
  }
  func.func @transform_0(%arg0: i32) -> (i32, i32) {
    %c0_i32 = arith.constant 0 : i32
    %c0_i32_0 = arith.constant 0 : i32
    return %arg0, %c0_i32 : i32, i32
  }
  func.func @transform_1(%arg0: i32) -> (i32, i32) {
    %c0_i32 = arith.constant 0 : i32
    %c0_i32_0 = arith.constant 0 : i32
    return %arg0, %c0_i32 : i32, i32
  }
  func.func @transform_2(%arg0: i32) -> (i32, i32) {
    %c0_i32 = arith.constant 0 : i32
    %c0_i32_0 = arith.constant 0 : i32
    %c0_i32_1 = arith.constant 0 : i32
    return %c0_i32, %c0_i32_0 : i32, i32
  }
  func.func @transform_3(%arg0: i32) -> (i32, i32) {
    %c0_i32 = arith.constant 0 : i32
    %c0_i32_0 = arith.constant 0 : i32
    %c0_i32_1 = arith.constant 0 : i32
    return %c0_i32, %c0_i32_0 : i32, i32
  }
  func.func @transform_4(%arg0: i32) -> (i32, i32) {
    %c0_i32 = arith.constant 0 : i32
    %c0_i32_0 = arith.constant 0 : i32
    %c0_i32_1 = arith.constant 0 : i32
    return %c0_i32, %c0_i32_0 : i32, i32
  }
  func.func @transform_5(%arg0: i32) -> (i32, i32) {
    %c0_i32 = arith.constant 0 : i32
    %c0_i32_0 = arith.constant 0 : i32
    %c0_i32_1 = arith.constant 0 : i32
    return %c0_i32, %c0_i32_0 : i32, i32
  }
  func.func @transform_6(%arg0: i32) -> (i32, i32) {
    %c0_i32 = arith.constant 0 : i32
    %c0_i32_0 = arith.constant 0 : i32
    %c0_i32_1 = arith.constant 0 : i32
    return %c0_i32, %c0_i32_0 : i32, i32
  }
  func.func @transform_7(%arg0: i32) -> (i32, i32) {
    %c0_i32 = arith.constant 0 : i32
    %c0_i32_0 = arith.constant 0 : i32
    return %arg0, %c0_i32 : i32, i32
  }
}

</mosaic_0001>

<llo_original>
// kernel: tpu_custom_call.1
$region0: #{tpu_custom_call.1}
  #allocation0 [shape = 'u32[]', space=smem, size = 0x4, offset = 0x4, fixed_abs, tag = 'smem constant byte address 0x4 - core index']
  #allocation1 [shape = 'u32[144,128]{1,0:T(1,128)}', space=vmem, size = 0x12000, scoped, tag = 'internal scratch']
  %s0 = inlined_call_operand.vmem [shape: bf16[8,4], index: 0, kind: input, shape index: {}]
  %s1 = inlined_call_operand.vmem [shape: bf16[8,4], index: 1, kind: input, shape index: {}]
  %s2 = inlined_call_operand.vmem [shape: bf16[4,32], index: 2, kind: input, shape index: {}]
  %s3 = inlined_call_operand.vmem [shape: bf16[4,32], index: 3, kind: input, shape index: {}]
  %s4 = inlined_call_operand.vmem [shape: f32[1,32], index: 4, kind: input, shape index: {}]
  %s5 = inlined_call_operand.vmem [shape: bf16[32,16], index: 5, kind: input, shape index: {}]
  %s6 = inlined_call_operand.vmem [shape: f32[1,16], index: 6, kind: input, shape index: {}]
  %s7 = inlined_call_operand.hbm [shape: f32[8,16], index: 7, kind: output, shape index: {}]
  %s8 = sld [smem:[#allocation0]]
  $region38: #{tpu_custom_call.1} parent=0
    _
  %s10 = ssub.s32 1, %s8
  %s11 = scalar_select 0, %s10, %s8
  $region1: #{tpu_custom_call.1} parent=0
    #allocation2 [shape = 'u8[4096]{0}', space=vmem, size = 0x1000, scoped, tag = 'output window, operand 0, single buffered']
    #allocation3 [shape = 's32[1]{0}', space=sflag, size = 0x4, scoped, tag = 'scoped memory for tpu_custom_call.1']
    %12 = vsyncpa [#allocation3], 0
    // Predicated region
    $region2: #{tpu_custom_call.1} parent=1 // pred_check
      _
    $region3: #{tpu_custom_call.1} parent=1 // pred_check_branch
      %14 = sbr.rel (0) target = $region5
    $region4: #{tpu_custom_call.1} parent=1 // pred_region
      _
    $region5: #{tpu_custom_call.1} parent=1 // pred_fallthru
      _
    // Predicated region
    $region6: #{tpu_custom_call.1} parent=1 // pred_check
      _
    $region7: #{tpu_custom_call.1} parent=1 // pred_check_branch
      %16 = sbr.rel (0) target = $region9
    $region8: #{tpu_custom_call.1} parent=1 // pred_region
      _
    $region9: #{tpu_custom_call.1} parent=1 // pred_fallthru
      _
    // Predicated region
    $region10: #{tpu_custom_call.1} parent=1 // pred_check
      _
    $region11: #{tpu_custom_call.1} parent=1 // pred_check_branch
      %18 = sbr.rel (0) target = $region13
    $region12: #{tpu_custom_call.1} parent=1 // pred_region
      _
    $region13: #{tpu_custom_call.1} parent=1 // pred_fallthru
      _
    // Predicated region
    $region14: #{tpu_custom_call.1} parent=1 // pred_check
      _
    $region15: #{tpu_custom_call.1} parent=1 // pred_check_branch
      %20 = sbr.rel (0) target = $region17
    $region16: #{tpu_custom_call.1} parent=1 // pred_region
      _
    $region17: #{tpu_custom_call.1} parent=1 // pred_fallthru
      _
    // Predicated region
    $region18: #{tpu_custom_call.1} parent=1 // pred_check
      _
    $region19: #{tpu_custom_call.1} parent=1 // pred_check_branch
      %22 = sbr.rel (0) target = $region21
    $region20: #{tpu_custom_call.1} parent=1 // pred_region
      _
    $region21: #{tpu_custom_call.1} parent=1 // pred_fallthru
      _
    // Predicated region
    $region22: #{tpu_custom_call.1} parent=1 // pred_check
      _
    $region23: #{tpu_custom_call.1} parent=1 // pred_check_branch
      %24 = sbr.rel (0) target = $region25
    $region24: #{tpu_custom_call.1} parent=1 // pred_region
      _
    $region25: #{tpu_custom_call.1} parent=1 // pred_fallthru
      _
    // Predicated region
    $region26: #{tpu_custom_call.1} parent=1 // pred_check
      _
    $region27: #{tpu_custom_call.1} parent=1 // pred_check_branch
      %26 = sbr.rel (0) target = $region29
    $region28: #{tpu_custom_call.1} parent=1 // pred_region
      _
    $region29: #{tpu_custom_call.1} parent=1 // pred_fallthru
      _
    %v28 = vld [vmem:[%s0] sm:$0xf]
    %v29 = vld [vmem:[%s2] sm:$0x3]
    %v30 = vld [vmem:[%s1] sm:$0xf]
    %v31 = vld [vmem:[%s3] sm:$0x3]
    %vm32 = vcmask 31744
    %v34 = vsel %vm32, %v30, 0
    %vm36 = vcmask 1041408
    %v38 = vsel %vm36, %v31, 0
    %40 = vmatprep.subr.bf16.mxu0 0
    %41 = vmatpush1.bf16.msra.mxu0 %v38
    %42 = vmatprep.subr.bf16.mxu0 0
    %43 = vmatpush1.bf16.msra.mxu0 0
    %44 = vmatprep.subr.bf16.mxu0 0
    %45 = vmatpush1.bf16.msra.mxu0 0
    %46 = vmatprep.subr.bf16.mxu0 0
    %47 = vmatpush1.bf16.msra.mxu0 0
    %48 = vmatprep.subr.bf16.mxu0 0
    %49 = vmatpush1.bf16.msra.mxu0 0
    %50 = vmatprep.subr.bf16.mxu0 0
    %51 = vmatpush1.bf16.msra.mxu0 0
    %52 = vmatprep.subr.bf16.mxu0 0
    %53 = vmatpush1.bf16.msra.mxu0 0
    %54 = vmatprep.subr.bf16.mxu0 0
    %55 = vmatpush1.bf16.msra.mxu0 0
    %56 = vmatprep.subr.bf16.mxu0 0
    %57 = vmatpush1.bf16.msra.mxu0 0
    %58 = vmatprep.subr.bf16.mxu0 0
    %59 = vmatpush1.bf16.msra.mxu0 0
    %60 = vmatprep.subr.bf16.mxu0 0
    %61 = vmatpush1.bf16.msra.mxu0 0
    %62 = vmatprep.subr.bf16.mxu0 0
    %63 = vmatpush1.bf16.msra.mxu0 0
    %64 = vmatprep.subr.bf16.mxu0 0
    %65 = vmatpush1.bf16.msra.mxu0 0
    %66 = vmatprep.subr.bf16.mxu0 0
    %67 = vmatpush1.bf16.msra.mxu0 0
    %68 = vmatprep.subr.bf16.mxu0 0
    %69 = vmatpush1.bf16.msra.mxu0 0
    %70 = vmatprep.subr.bf16.mxu0 0
    %71 = vmatpush1.bf16.msra.mxu0 0
    %72 = vmatprep.mubr.bf16.mxu0 0
    %73 = vmatmul.mubr.bf16.gmra.mrb[0].mxu0 %v34
    %v74 = vpop.f32.mrb[0].mxu0
    %v75 = vadd.f32 0.0, %v74
    %v76 = vpop.f32.mrb[0].mxu0
    %v77 = vpop.f32.mrb[0].mxu0
    %v78 = vpop.f32.mrb[0].mxu0
    %79 = vdwg.mxu0
    %v81 = vsel %vm32, %v28, 0
    %v84 = vsel %vm36, %v29, 0
    %86 = vmatprep.subr.bf16.mxu0 0
    %87 = vmatpush1.bf16.msra.mxu0 %v84
    %88 = vmatprep.subr.bf16.mxu0 0
    %89 = vmatpush1.bf16.msra.mxu0 0
    %90 = vmatprep.subr.bf16.mxu0 0
    %91 = vmatpush1.bf16.msra.mxu0 0
    %92 = vmatprep.subr.bf16.mxu0 0
    %93 = vmatpush1.bf16.msra.mxu0 0
    %94 = vmatprep.subr.bf16.mxu0 0
    %95 = vmatpush1.bf16.msra.mxu0 0
    %96 = vmatprep.subr.bf16.mxu0 0
    %97 = vmatpush1.bf16.msra.mxu0 0
    %98 = vmatprep.subr.bf16.mxu0 0
    %99 = vmatpush1.bf16.msra.mxu0 0
    %100 = vmatprep.subr.bf16.mxu0 0
    %101 = vmatpush1.bf16.msra.mxu0 0
    %102 = vmatprep.subr.bf16.mxu0 0
    %103 = vmatpush1.bf16.msra.mxu0 0
    %104 = vmatprep.subr.bf16.mxu0 0
    %105 = vmatpush1.bf16.msra.mxu0 0
    %106 = vmatprep.subr.bf16.mxu0 0
    %107 = vmatpush1.bf16.msra.mxu0 0
    %108 = vmatprep.subr.bf16.mxu0 0
    %109 = vmatpush1.bf16.msra.mxu0 0
    %110 = vmatprep.subr.bf16.mxu0 0
    %111 = vmatpush1.bf16.msra.mxu0 0
    %112 = vmatprep.subr.bf16.mxu0 0
    %113 = vmatpush1.bf16.msra.mxu0 0
    %114 = vmatprep.subr.bf16.mxu0 0
    %115 = vmatpush1.bf16.msra.mxu0 0
    %116 = vmatprep.subr.bf16.mxu0 0
    %117 = vmatpush1.bf16.msra.mxu0 0
    %118 = vmatprep.mubr.bf16.mxu0 0
    %119 = vmatmul.mubr.bf16.gmra.mrb[0].mxu0 %v81
    %v120 = vpop.f32.mrb[0].mxu0
    %v121 = vadd.f32 %v75, %v120
    %v122 = vpop.f32.mrb[0].mxu0
    %v123 = vpop.f32.mrb[0].mxu0
    %v124 = vpop.f32.mrb[0].mxu0
    %125 = vdwg.mxu0
    %v126 = vld [vmem:[%s4] sm:$0x1]
    %v128 = vlaneseq
    %v129 = vshrl.u32 %v128, 7
    %v130 = vsub.s32 0, %v129
    %v131 = vrot.slane %v126, %v130
    %v133 = vadd.f32 %v121, %v131
    %v134 = vtanh.pop %v133
    %v135 = vpack.c.bf16 %v134, %v134
    %v136 = vld [vmem:[%s5] sm:$0xf]
    %v137 = vld [vmem:[%s5 + $0x4] sm:$0xf]
    %v138 = vld [vmem:[%s5 + $0x8] sm:$0xf]
    %v139 = vld [vmem:[%s5 + $0xc] sm:$0xf]
    %v140 = vld [vmem:[%s6] sm:$0x1]
    %v142 = vlaneseq
    %v143 = vshrl.u32 %v142, 7
    %v144 = vsub.s32 0, %v143
    %v145 = vrot.slane %v140, %v144
    %v151 = vunpack.c.l.b16 %v136
    %v152 = vunpack.c.l.b16 %v137
    %v153 = vunpack.c.l.b16 %v138
    %v154 = vunpack.c.l.b16 %v139
    %v155 = vpack.c.b16 %v152, %v151
    %v156 = vpack.c.b16 %v154, %v153
    %vm159 = vcmask 261120
    %v161 = vsel %vm159, %v135, 0
    %163 = vmatprep.subr.bf16.mxu0 0
    %164 = vmatpush1.bf16.msra.mxu0 %v155
    %165 = vmatprep.subr.bf16.mxu0 0
    %166 = vmatpush1.bf16.msra.mxu0 %v156
    %167 = vmatprep.subr.bf16.mxu0 0
    %168 = vmatpush1.bf16.msra.mxu0 0
    %169 = vmatprep.subr.bf16.mxu0 0
    %170 = vmatpush1.bf16.msra.mxu0 0
    %171 = vmatprep.subr.bf16.mxu0 0
    %172 = vmatpush1.bf16.msra.mxu0 0
    %173 = vmatprep.subr.bf16.mxu0 0
    %174 = vmatpush1.bf16.msra.mxu0 0
    %175 = vmatprep.subr.bf16.mxu0 0
    %176 = vmatpush1.bf16.msra.mxu0 0
    %177 = vmatprep.subr.bf16.mxu0 0
    %178 = vmatpush1.bf16.msra.mxu0 0
    %179 = vmatprep.subr.bf16.mxu0 0
    %180 = vmatpush1.bf16.msra.mxu0 0
    %181 = vmatprep.subr.bf16.mxu0 0
    %182 = vmatpush1.bf16.msra.mxu0 0
    %183 = vmatprep.subr.bf16.mxu0 0
    %184 = vmatpush1.bf16.msra.mxu0 0
    %185 = vmatprep.subr.bf16.mxu0 0
    %186 = vmatpush1.bf16.msra.mxu0 0
    %187 = vmatprep.subr.bf16.mxu0 0
    %188 = vmatpush1.bf16.msra.mxu0 0
    %189 = vmatprep.subr.bf16.mxu0 0
    %190 = vmatpush1.bf16.msra.mxu0 0
    %191 = vmatprep.subr.bf16.mxu0 0
    %192 = vmatpush1.bf16.msra.mxu0 0
    %193 = vmatprep.subr.bf16.mxu0 0
    %194 = vmatpush1.bf16.msra.mxu0 0
    %195 = vmatprep.mubr.bf16.mxu0 0
    %196 = vmatmul.mubr.bf16.gmra.mrb[0].mxu0 %v161
    %v197 = vpop.f32.mrb[0].mxu0
    %v198 = vadd.f32 %v145, %v197
    %v199 = vpop.f32.mrb[0].mxu0
    %v200 = vpop.f32.mrb[0].mxu0
    %v201 = vpop.f32.mrb[0].mxu0
    %202 = vdwg.mxu0
    %vm203 = vcmask 130048
    %204 = vst.msk [vmem:[#allocation2] sm:$0xff] %vm203, %v198
    // Predicated region
    $region30: #{tpu_custom_call.1} parent=1 // pred_check
      _
    $region31: #{tpu_custom_call.1} parent=1 // pred_check_branch
      %206 = sbr.rel (0) target = $region33
    $region32: #{tpu_custom_call.1} parent=1 // pred_region
      %s208 = ssub.s32 128, 128
      %209 = vsyncadd [#allocation3], %s208
      %s211 = sshll.u32 [#allocation2], 4
      %s212 = int_to_ptr.vmem [resolvable:$true] %s211
      %214 = dma.vmem_to_hbm [thread:$0]  %s212, 128, %s7, [#allocation3]
    $region33: #{tpu_custom_call.1} parent=1 // pred_fallthru
      _
    // Predicated region
    $region34: #{tpu_custom_call.1} parent=1 // pred_check
      _
    $region35: #{tpu_custom_call.1} parent=1 // pred_check_branch
      %216 = sbr.rel (0) target = $region37
    $region36: #{tpu_custom_call.1} parent=1 // pred_region
      %217 = dma.done [#allocation3], 128
    $region37: #{tpu_custom_call.1} parent=1 // pred_fallthru
      _
    %218 = vsyncpa [#allocation3], 1

</llo_original>
